<compile_context>
chip_gen: v7x
topology: tpu7x:2x2x1
jax: 0.10.0
libtpu: 0.0.40
codegen_flags: <defaults>
</compile_context>

<pallas_src>
import jax
import jax.numpy as jnp
from jax.experimental import pallas as pl
from jax.experimental.pallas import tpu as pltpu

HIDDEN = 32          # hidden_channels
OUT = 8              # out_channels
NUM_LAYERS = 2       # num_layers (kernel below is specialized to 2)
FEAT_DIMS = {"paper": 16, "author": 12}
FP = FEAT_DIMS["paper"]
FA = FEAT_DIMS["author"]
ET_WR = ("author", "writes", "paper")
ET_CI = ("paper", "cites", "paper")
ET_RV = ("paper", "rev_writes", "author")
EDGE_TYPES = [ET_WR, ET_CI, ET_RV]

_VMEM = pl.BlockSpec(memory_space=pltpu.MemorySpace.VMEM)

# Packed bf16 weight slab layout, shape (128, 128):
#   rows [  0:FP   ], lanes [0:3H ] = [ Wl0_cites | Wl0_rev_writes | Wr0_paper(folded) ]   LHS = x_paper
#   rows [ 16:16+FA], lanes [0:2H ] = [ Wl0_writes | Wr0_author ]                          LHS = x_author
#   rows [ 32:64   ], lanes [0:2H ] = [ Wl1_cites | Wr1_paper(folded) ]                    LHS = h_paper
#   rows [ 64:96   ], lanes [0: H ] =   Wl1_writes                                         LHS = h_author
#   rows [ 96:128  ], lanes [0:OUT] =   final Linear weight                                 LHS = h_paper^(1)
# Packed f32 bias slab, shape (1, 128): [ b0_paper | b0_author | b1_paper | b_lin | 0... ]
_W_ROWS, _W_LANES = 128, 128


# ---------------------------------------------------------------------------
# Fused Pallas kernel: whole forward pass in one launch (everything in VMEM)
# ---------------------------------------------------------------------------
def _fused_forward_kernel(xp_ref, xa_ref, a0p_ref, a0a_ref, a1p_ref,
                          w_ref, b_ref, o_ref, msg_ref):
    f32, bf16 = jnp.float32, jnp.bfloat16
    H = HIDDEN
    P = xp_ref.shape[0]          # padded paper rows (multiple of 16)
    A = xa_ref.shape[0]          # padded author rows (multiple of 16)

    xp = xp_ref[...]             # (P, FP) bf16
    xa = xa_ref[...]             # (A, FA) bf16

    # ---------------- layer 0 -------------------------------------------------
    # Per-src-type transforms, N-concatenated (one MXU pass per shared LHS).
    tp0 = jnp.dot(xp, w_ref[0:FP, 0:3 * H], preferred_element_type=f32)          # (P, 96)
    ta0 = jnp.dot(xa, w_ref[16:16 + FA, 0:2 * H], preferred_element_type=f32)    # (A, 64)
    m_ci0 = tp0[:, 0:H]            # msg paper --cites-->      paper
    m_rv0 = tp0[:, H:2 * H]        # msg paper --rev_writes--> author
    root_p0 = tp0[:, 2 * H:3 * H]  # folded root transform, paper dst
    m_wr0 = ta0[:, 0:H]            # msg author --writes-->    paper
    root_a0 = ta0[:, H:2 * H]      # root transform, author dst

    # K-stacked mean aggregation + HeteroConv 'sum' for the 'paper' dst type.
    msg_ref[0:A, :] = m_wr0.astype(bf16)
    msg_ref[A:A + P, :] = m_ci0.astype(bf16)
    agg_p0 = jnp.dot(a0p_ref[...], msg_ref[...], preferred_element_type=f32)      # (P, H)
    # 'author' dst has a single incoming edge type.
    agg_a0 = jnp.dot(a0a_ref[...], m_rv0.astype(bf16), preferred_element_type=f32)  # (A, H)

    h_p = jnp.maximum(agg_p0 + root_p0 + b_ref[0:1, 0:H], 0.0)                    # (P, H) f32
    h_a = jnp.maximum(agg_a0 + root_a0 + b_ref[0:1, H:2 * H], 0.0)                # (A, H) f32

    # ---------------- layer 1 (only the 'paper' dst feeds the final Linear) ---
    tp1 = jnp.dot(h_p.astype(bf16), w_ref[32:64, 0:2 * H],
                  preferred_element_type=f32)                                      # (P, 64)
    m_ci1 = tp1[:, 0:H]
    root_p1 = tp1[:, H:2 * H]
    m_wr1 = jnp.dot(h_a.astype(bf16), w_ref[64:96, 0:H],
                    preferred_element_type=f32)                                    # (A, H)

    msg_ref[0:A, :] = m_wr1.astype(bf16)
    msg_ref[A:A + P, :] = m_ci1.astype(bf16)
    agg_p1 = jnp.dot(a1p_ref[...], msg_ref[...], preferred_element_type=f32)       # (P, H)

    h_p1 = jnp.maximum(agg_p1 + root_p1 + b_ref[0:1, 2 * H:3 * H], 0.0)            # (P, H)

    # ---------------- final Linear(hidden -> out) ------------------------------
    o_ref[...] = (jnp.dot(h_p1.astype(bf16), w_ref[96:128, 0:OUT],
                          preferred_element_type=f32)
                  + b_ref[0:1, 3 * H:3 * H + OUT])


# ---------------------------------------------------------------------------
# Glue (plain JAX): adjacency construction, trim_to_layer slicing, param init
# ---------------------------------------------------------------------------
def _pad_to(n, m=16):
    return ((n + m - 1) // m) * m


def _pad_rows(x, rows):
    return jnp.pad(x, ((0, rows - x.shape[0]), (0, 0)))


def build_mean_adj(edge_index, num_dst_pad, num_src_pad):
    # A[d, s] = (#edges s->d) / (#edges into d); rows with no edges stay 0
    # (matches SAGEConv's default scatter-mean; padded/trimmed rows stay 0).
    src, dst = edge_index[0], edge_index[1]
    a = jnp.zeros((num_dst_pad, num_src_pad), jnp.float32).at[dst, src].add(1.0)
    deg = jnp.sum(a, axis=1, keepdims=True)
    return a / jnp.maximum(deg, 1.0)


def init_params(key):
    params = {"convs": []}
    for layer in range(NUM_LAYERS):
        layer_p = {}
        for et in EDGE_TYPES:
            src_t, _, dst_t = et
            in_src = FEAT_DIMS[src_t] if layer == 0 else HIDDEN
            in_dst = FEAT_DIMS[dst_t] if layer == 0 else HIDDEN
            key, k1, k2, k3 = jax.random.split(key, 4)
            layer_p[et] = {
                "wl_t": jax.random.normal(k1, (in_src, HIDDEN), jnp.float32)
                / jnp.sqrt(float(in_src)),
                "bl": jax.random.normal(k2, (HIDDEN,), jnp.float32) * 0.01,
                "wr_t": jax.random.normal(k3, (in_dst, HIDDEN), jnp.float32)
                / jnp.sqrt(float(in_dst)),
            }
        params["convs"].append(layer_p)
    key, k1, k2 = jax.random.split(key, 3)
    params["lin"] = {
        "w_t": jax.random.normal(k1, (HIDDEN, OUT), jnp.float32)
        / jnp.sqrt(float(HIDDEN)),
        "b": jax.random.normal(k2, (OUT,), jnp.float32) * 0.01,
    }
    return params


def hierarchical_hetero_graphsage(
    params, x_dict, edge_index_dict, num_sampled_edges_dict, num_sampled_nodes_dict
):
    assert NUM_LAYERS == 2, "fused kernel is specialized to num_layers == 2"
    bf16 = jnp.bfloat16
    H = HIDDEN

    n_p = x_dict["paper"].shape[0]
    n_a = x_dict["author"].shape[0]
    P, A = _pad_to(n_p), _pad_to(n_a)   # pad to 16 rows for bf16 sublane packing

    xp = _pad_rows(x_dict["paper"], P).astype(bf16)
    xa = _pad_rows(x_dict["author"], A).astype(bf16)

    # Layer-0 adjacencies from the full sampled edge lists.
    a0_wr = build_mean_adj(edge_index_dict[ET_WR], P, A)
    a0_ci = build_mean_adj(edge_index_dict[ET_CI], P, P)
    a0_rv = build_mean_adj(edge_index_dict[ET_RV], A, P)

    # trim_to_layer for layer 1: drop the outermost sampling hop's edges (static
    # slice).  Trimmed-away / padded nodes receive no edges, so their adjacency
    # columns are zero and their (garbage) output rows are sliced off below.
    def _trim(et):
        ei = edge_index_dict[et]
        keep = ei.shape[1] - num_sampled_edges_dict[et][-1]
        return ei[:, :keep]

    a1_wr = build_mean_adj(_trim(ET_WR), P, A)
    a1_ci = build_mean_adj(_trim(ET_CI), P, P)

    # K-stacked adjacency for the 'paper' dst: cols [0:A] = author srcs (writes),
    # cols [A:A+P] = paper srcs (cites).  Matches the msg scratch stacking.
    a0p_cat = jnp.concatenate([a0_wr, a0_ci], axis=1).astype(bf16)   # (P, A+P)
    a1p_cat = jnp.concatenate([a1_wr, a1_ci], axis=1).astype(bf16)   # (P, A+P)
    a0a = a0_rv.astype(bf16)                                         # (A, P)

    c0, c1 = params["convs"][0], params["convs"][1]
    # HeteroConv aggr='sum' => root weights / biases sharing a dst type fold.
    wr0_p = c0[ET_WR]["wr_t"] + c0[ET_CI]["wr_t"]
    wr1_p = c1[ET_WR]["wr_t"] + c1[ET_CI]["wr_t"]

    # Pack all weights into one bf16 slab, all biases into one f32 slab.
    w_slab = jnp.zeros((_W_ROWS, _W_LANES), jnp.float32)
    w_slab = w_slab.at[0:FP, 0:H].set(c0[ET_CI]["wl_t"])
    w_slab = w_slab.at[0:FP, H:2 * H].set(c0[ET_RV]["wl_t"])
    w_slab = w_slab.at[0:FP, 2 * H:3 * H].set(wr0_p)
    w_slab = w_slab.at[16:16 + FA, 0:H].set(c0[ET_WR]["wl_t"])
    w_slab = w_slab.at[16:16 + FA, H:2 * H].set(c0[ET_RV]["wr_t"])
    w_slab = w_slab.at[32:64, 0:H].set(c1[ET_CI]["wl_t"])
    w_slab = w_slab.at[32:64, H:2 * H].set(wr1_p)
    w_slab = w_slab.at[64:96, 0:H].set(c1[ET_WR]["wl_t"])
    w_slab = w_slab.at[96:128, 0:OUT].set(params["lin"]["w_t"])
    w_slab = w_slab.astype(bf16)

    b_slab = jnp.zeros((1, 128), jnp.float32)
    b_slab = b_slab.at[0, 0:H].set(c0[ET_WR]["bl"] + c0[ET_CI]["bl"])
    b_slab = b_slab.at[0, H:2 * H].set(c0[ET_RV]["bl"])
    b_slab = b_slab.at[0, 2 * H:3 * H].set(c1[ET_WR]["bl"] + c1[ET_CI]["bl"])
    b_slab = b_slab.at[0, 3 * H:3 * H + OUT].set(params["lin"]["b"])

    operands = (xp, xa, a0p_cat, a0a, a1p_cat, w_slab, b_slab)

    out_pad = pl.pallas_call(
        _fused_forward_kernel,
        out_shape=jax.ShapeDtypeStruct((P, OUT), jnp.float32),
        in_specs=[_VMEM] * len(operands),
        out_specs=_VMEM,
        scratch_shapes=[pltpu.VMEM((A + P, HIDDEN), jnp.bfloat16)],  # stacked messages
        compiler_params=pltpu.CompilerParams(vmem_limit_bytes=32 * 1024 * 1024),
    )(*operands)

    # Final trim: only the paper nodes surviving the last trim_to_layer are valid.
    n_out = n_p - num_sampled_nodes_dict["paper"][-1]
    return out_pad[:n_out]


# ---------------------------------------------------------------------------
if __name__ == "__main__":
    key = jax.random.PRNGKey(0)

    num_sampled_nodes_dict = {"paper": [4, 6, 8], "author": [2, 4, 6]}
    num_sampled_edges_dict = {
        ET_WR: [5, 9],
        ET_CI: [6, 10],
        ET_RV: [4, 8],
    }
    num_nodes = {k: sum(v) for k, v in num_sampled_nodes_dict.items()}

    key, kp, ka = jax.random.split(key, 3)
    x_dict = {
        "paper": jax.random.normal(
            kp, (num_nodes["paper"], FEAT_DIMS["paper"]), jnp.float32
        ),
        "author": jax.random.normal(
            ka, (num_nodes["author"], FEAT_DIMS["author"]), jnp.float32
        ),
    }

    # Edges generated per hop so that the hop-1 prefix stays index-valid after trim.
    edge_index_dict = {}
    for et, counts in num_sampled_edges_dict.items():
        src_t, _, dst_t = et
        s0, s1 = num_sampled_nodes_dict[src_t][0], num_sampled_nodes_dict[src_t][1]
        d0, d1 = num_sampled_nodes_dict[dst_t][0], num_sampled_nodes_dict[dst_t][1]
        key, k1, k2, k3, k4 = jax.random.split(key, 5)
        src1 = jax.random.randint(k1, (counts[0],), 0, s0 + s1, jnp.int32)
        dst1 = jax.random.randint(k2, (counts[0],), 0, d0, jnp.int32)
        src2 = jax.random.randint(k3, (counts[1],), 0, num_nodes[src_t], jnp.int32)
        dst2 = jax.random.randint(k4, (counts[1],), 0, d0 + d1, jnp.int32)
        edge_index_dict[et] = jnp.stack(
            [jnp.concatenate([src1, src2]), jnp.concatenate([dst1, dst2])]
        )

    params = init_params(jax.random.PRNGKey(42))

    out = hierarchical_hetero_graphsage(
        params, x_dict, edge_index_dict, num_sampled_edges_dict, num_sampled_nodes_dict
    )
    out = jax.block_until_ready(out)
    assert out.shape == (sum(num_sampled_nodes_dict["paper"][:-1]), OUT), out.shape
    assert bool(jnp.all(jnp.isfinite(out)))
    print("KERNEL_OK")
</pallas_src>

<mosaic_0001>
module attributes {stable_mosaic.version = 11 : i64} {
  func.func @_fused_forward_kernel(%arg0: memref<32x16xbf16, #tpu.memory_space<vmem>>, %arg1: memref<16x12xbf16, #tpu.memory_space<vmem>>, %arg2: memref<32x48xbf16, #tpu.memory_space<vmem>>, %arg3: memref<16x32xbf16, #tpu.memory_space<vmem>>, %arg4: memref<32x48xbf16, #tpu.memory_space<vmem>>, %arg5: memref<128x128xbf16, #tpu.memory_space<vmem>>, %arg6: memref<1x128xf32, #tpu.memory_space<vmem>>, %arg7: memref<32x8xf32, #tpu.memory_space<vmem>>, %arg8: memref<48x32xbf16, #tpu.memory_space<vmem>>) attributes {dimension_semantics = [], scalar_prefetch = 0 : i64, scratch_operands = 1 : i64, tpu.core_type = #tpu.core_type<tc>} {
    %c0 = arith.constant 0 : index
    %c0_0 = arith.constant 0 : index
    %0 = vector.load %arg0[%c0, %c0_0] : memref<32x16xbf16, #tpu.memory_space<vmem>>, vector<32x16xbf16>
    %c0_1 = arith.constant 0 : index
    %c0_2 = arith.constant 0 : index
    %1 = vector.load %arg1[%c0_1, %c0_2] : memref<16x12xbf16, #tpu.memory_space<vmem>>, vector<16x12xbf16>
    %c0_3 = arith.constant 0 : index
    %c0_4 = arith.constant 0 : index
    %2 = vector.load %arg5[%c0_3, %c0_4] : memref<128x128xbf16, #tpu.memory_space<vmem>>, vector<16x96xbf16>
    %cst = arith.constant dense<0.000000e+00> : vector<32x96xf32>
    %3 = tpu.matmul %0, %2, %cst {dimension_numbers = #tpu.dot_dimension_numbers<[1], [0], [0], [1], [0, 0, 1, 1], [], []>} : vector<32x16xbf16>, vector<16x96xbf16>, vector<32x96xf32> -> vector<32x96xf32>
    %c16 = arith.constant 16 : index
    %c0_5 = arith.constant 0 : index
    %4 = vector.load %arg5[%c16, %c0_5] : memref<128x128xbf16, #tpu.memory_space<vmem>>, vector<12x64xbf16>
    %cst_6 = arith.constant dense<0.000000e+00> : vector<16x64xf32>
    %5 = tpu.matmul %1, %4, %cst_6 {dimension_numbers = #tpu.dot_dimension_numbers<[1], [0], [0], [1], [0, 0, 1, 1], [], []>} : vector<16x12xbf16>, vector<12x64xbf16>, vector<16x64xf32> -> vector<16x64xf32>
    %6 = vector.extract_strided_slice %3 {offsets = [0, 0], sizes = [32, 32], strides = [1, 1]} : vector<32x96xf32> to vector<32x32xf32>
    %7 = vector.extract_strided_slice %3 {offsets = [0, 32], sizes = [32, 32], strides = [1, 1]} : vector<32x96xf32> to vector<32x32xf32>
    %8 = vector.extract_strided_slice %3 {offsets = [0, 64], sizes = [32, 32], strides = [1, 1]} : vector<32x96xf32> to vector<32x32xf32>
    %9 = vector.extract_strided_slice %5 {offsets = [0, 0], sizes = [16, 32], strides = [1, 1]} : vector<16x64xf32> to vector<16x32xf32>
    %10 = vector.extract_strided_slice %5 {offsets = [0, 32], sizes = [16, 32], strides = [1, 1]} : vector<16x64xf32> to vector<16x32xf32>
    %11 = arith.truncf %9 : vector<16x32xf32> to vector<16x32xbf16>
    %c0_7 = arith.constant 0 : index
    %c0_8 = arith.constant 0 : index
    %12 = vector.load %arg8[%c0_7, %c0_8] : memref<48x32xbf16, #tpu.memory_space<vmem>>, vector<16x32xbf16>
    tpu.vector_store %arg8[%c0_7, %c0_8], %11 {strides = array<i32>} : memref<48x32xbf16, #tpu.memory_space<vmem>>, vector<16x32xbf16>,
    %13 = arith.truncf %6 : vector<32x32xf32> to vector<32x32xbf16>
    %c16_9 = arith.constant 16 : index
    %c0_10 = arith.constant 0 : index
    %14 = vector.load %arg8[%c16_9, %c0_10] : memref<48x32xbf16, #tpu.memory_space<vmem>>, vector<32x32xbf16>
    tpu.vector_store %arg8[%c16_9, %c0_10], %13 {strides = array<i32>} : memref<48x32xbf16, #tpu.memory_space<vmem>>, vector<32x32xbf16>,
    %c0_11 = arith.constant 0 : index
    %c0_12 = arith.constant 0 : index
    %15 = vector.load %arg2[%c0_11, %c0_12] : memref<32x48xbf16, #tpu.memory_space<vmem>>, vector<32x48xbf16>
    %c0_13 = arith.constant 0 : index
    %c0_14 = arith.constant 0 : index
    %16 = vector.load %arg8[%c0_13, %c0_14] : memref<48x32xbf16, #tpu.memory_space<vmem>>, vector<48x32xbf16>
    %cst_15 = arith.constant dense<0.000000e+00> : vector<32x32xf32>
    %17 = tpu.matmul %15, %16, %cst_15 {dimension_numbers = #tpu.dot_dimension_numbers<[1], [0], [0], [1], [0, 0, 1, 1], [], []>} : vector<32x48xbf16>, vector<48x32xbf16>, vector<32x32xf32> -> vector<32x32xf32>
    %c0_16 = arith.constant 0 : index
    %c0_17 = arith.constant 0 : index
    %18 = vector.load %arg3[%c0_16, %c0_17] : memref<16x32xbf16, #tpu.memory_space<vmem>>, vector<16x32xbf16>
    %19 = arith.truncf %7 : vector<32x32xf32> to vector<32x32xbf16>
    %cst_18 = arith.constant dense<0.000000e+00> : vector<16x32xf32>
    %20 = tpu.matmul %18, %19, %cst_18 {dimension_numbers = #tpu.dot_dimension_numbers<[1], [0], [0], [1], [0, 0, 1, 1], [], []>} : vector<16x32xbf16>, vector<32x32xbf16>, vector<16x32xf32> -> vector<16x32xf32>
    %21 = arith.addf %17, %8 : vector<32x32xf32>
    %c0_19 = arith.constant 0 : index
    %c0_20 = arith.constant 0 : index
    %22 = vector.load %arg6[%c0_19, %c0_20] : memref<1x128xf32, #tpu.memory_space<vmem>>, vector<1x32xf32>
    %23 = vector.broadcast %22 : vector<1x32xf32> to vector<32x32xf32>
    %24 = arith.addf %21, %23 : vector<32x32xf32>
    %cst_21 = arith.constant 0.000000e+00 : f32
    %25 = vector.broadcast %cst_21 : f32 to vector<32x32xf32>
    %26 = arith.maximumf %24, %25 : vector<32x32xf32>
    %27 = arith.addf %20, %10 : vector<16x32xf32>
    %c0_22 = arith.constant 0 : index
    %c32 = arith.constant 32 : index
    %28 = vector.load %arg6[%c0_22, %c32] : memref<1x128xf32, #tpu.memory_space<vmem>>, vector<1x32xf32>
    %29 = vector.broadcast %28 : vector<1x32xf32> to vector<16x32xf32>
    %30 = arith.addf %27, %29 : vector<16x32xf32>
    %cst_23 = arith.constant 0.000000e+00 : f32
    %31 = vector.broadcast %cst_23 : f32 to vector<16x32xf32>
    %32 = arith.maximumf %30, %31 : vector<16x32xf32>
    %33 = arith.truncf %26 : vector<32x32xf32> to vector<32x32xbf16>
    %c32_24 = arith.constant 32 : index
    %c0_25 = arith.constant 0 : index
    %34 = vector.load %arg5[%c32_24, %c0_25] : memref<128x128xbf16, #tpu.memory_space<vmem>>, vector<32x64xbf16>
    %cst_26 = arith.constant dense<0.000000e+00> : vector<32x64xf32>
    %35 = tpu.matmul %33, %34, %cst_26 {dimension_numbers = #tpu.dot_dimension_numbers<[1], [0], [0], [1], [0, 0, 1, 1], [], []>} : vector<32x32xbf16>, vector<32x64xbf16>, vector<32x64xf32> -> vector<32x64xf32>
    %36 = vector.extract_strided_slice %35 {offsets = [0, 0], sizes = [32, 32], strides = [1, 1]} : vector<32x64xf32> to vector<32x32xf32>
    %37 = vector.extract_strided_slice %35 {offsets = [0, 32], sizes = [32, 32], strides = [1, 1]} : vector<32x64xf32> to vector<32x32xf32>
    %38 = arith.truncf %32 : vector<16x32xf32> to vector<16x32xbf16>
    %c64 = arith.constant 64 : index
    %c0_27 = arith.constant 0 : index
    %39 = vector.load %arg5[%c64, %c0_27] : memref<128x128xbf16, #tpu.memory_space<vmem>>, vector<32x32xbf16>
    %cst_28 = arith.constant dense<0.000000e+00> : vector<16x32xf32>
    %40 = tpu.matmul %38, %39, %cst_28 {dimension_numbers = #tpu.dot_dimension_numbers<[1], [0], [0], [1], [0, 0, 1, 1], [], []>} : vector<16x32xbf16>, vector<32x32xbf16>, vector<16x32xf32> -> vector<16x32xf32>
    %41 = arith.truncf %40 : vector<16x32xf32> to vector<16x32xbf16>
    %c0_29 = arith.constant 0 : index
    %c0_30 = arith.constant 0 : index
    %42 = vector.load %arg8[%c0_29, %c0_30] : memref<48x32xbf16, #tpu.memory_space<vmem>>, vector<16x32xbf16>
    tpu.vector_store %arg8[%c0_29, %c0_30], %41 {strides = array<i32>} : memref<48x32xbf16, #tpu.memory_space<vmem>>, vector<16x32xbf16>,
    %43 = arith.truncf %36 : vector<32x32xf32> to vector<32x32xbf16>
    %c16_31 = arith.constant 16 : index
    %c0_32 = arith.constant 0 : index
    %44 = vector.load %arg8[%c16_31, %c0_32] : memref<48x32xbf16, #tpu.memory_space<vmem>>, vector<32x32xbf16>
    tpu.vector_store %arg8[%c16_31, %c0_32], %43 {strides = array<i32>} : memref<48x32xbf16, #tpu.memory_space<vmem>>, vector<32x32xbf16>,
    %c0_33 = arith.constant 0 : index
    %c0_34 = arith.constant 0 : index
    %45 = vector.load %arg4[%c0_33, %c0_34] : memref<32x48xbf16, #tpu.memory_space<vmem>>, vector<32x48xbf16>
    %c0_35 = arith.constant 0 : index
    %c0_36 = arith.constant 0 : index
    %46 = vector.load %arg8[%c0_35, %c0_36] : memref<48x32xbf16, #tpu.memory_space<vmem>>, vector<48x32xbf16>
    %cst_37 = arith.constant dense<0.000000e+00> : vector<32x32xf32>
    %47 = tpu.matmul %45, %46, %cst_37 {dimension_numbers = #tpu.dot_dimension_numbers<[1], [0], [0], [1], [0, 0, 1, 1], [], []>} : vector<32x48xbf16>, vector<48x32xbf16>, vector<32x32xf32> -> vector<32x32xf32>
    %48 = arith.addf %47, %37 : vector<32x32xf32>
    %c0_38 = arith.constant 0 : index
    %c64_39 = arith.constant 64 : index
    %49 = vector.load %arg6[%c0_38, %c64_39] : memref<1x128xf32, #tpu.memory_space<vmem>>, vector<1x32xf32>
    %50 = vector.broadcast %49 : vector<1x32xf32> to vector<32x32xf32>
    %51 = arith.addf %48, %50 : vector<32x32xf32>
    %cst_40 = arith.constant 0.000000e+00 : f32
    %52 = vector.broadcast %cst_40 : f32 to vector<32x32xf32>
    %53 = arith.maximumf %51, %52 : vector<32x32xf32>
    %54 = arith.truncf %53 : vector<32x32xf32> to vector<32x32xbf16>
    %c96 = arith.constant 96 : index
    %c0_41 = arith.constant 0 : index
    %55 = vector.load %arg5[%c96, %c0_41] : memref<128x128xbf16, #tpu.memory_space<vmem>>, vector<32x8xbf16>
    %cst_42 = arith.constant dense<0.000000e+00> : vector<32x8xf32>
    %56 = tpu.matmul %54, %55, %cst_42 {dimension_numbers = #tpu.dot_dimension_numbers<[1], [0], [0], [1], [0, 0, 1, 1], [], []>} : vector<32x32xbf16>, vector<32x8xbf16>, vector<32x8xf32> -> vector<32x8xf32>
    %c0_43 = arith.constant 0 : index
    %c96_44 = arith.constant 96 : index
    %57 = vector.load %arg6[%c0_43, %c96_44] : memref<1x128xf32, #tpu.memory_space<vmem>>, vector<1x8xf32>
    %58 = vector.broadcast %57 : vector<1x8xf32> to vector<32x8xf32>
    %59 = arith.addf %56, %58 : vector<32x8xf32>
    %c0_45 = arith.constant 0 : index
    %c0_46 = arith.constant 0 : index
    %60 = vector.load %arg7[%c0_45, %c0_46] : memref<32x8xf32, #tpu.memory_space<vmem>>, vector<32x8xf32>
    tpu.vector_store %arg7[%c0_45, %c0_46], %59 {strides = array<i32>} : memref<32x8xf32, #tpu.memory_space<vmem>>, vector<32x8xf32>,
    return
  }
}

</mosaic_0001>

<llo_original>
// kernel: tpu_custom_call.1
$region0: #{tpu_custom_call.1}
  #allocation0 [shape = 'u32[]', space=smem, size = 0x4, offset = 0x4, fixed_abs, tag = 'smem constant byte address 0x4 - core index']
  #allocation1 [shape = 'u32[144,128]{1,0:T(1,128)}', space=vmem, size = 0x12000, scoped, tag = 'internal scratch']
  #allocation2 [shape = 'bf16[48,32]{1,0:T(16,128)(2,1)}', space=vmem, size = 0x3000, scoped, tag = 'scratch operand']
  %s0 = inlined_call_operand.vmem [shape: bf16[32,16], index: 0, kind: input, shape index: {}]
  %s1 = inlined_call_operand.hbm [shape: bf16[16,12], index: 1, kind: input, shape index: {}]
  %s2 = inlined_call_operand.vmem [shape: bf16[32,48], index: 2, kind: input, shape index: {}]
  %s3 = inlined_call_operand.hbm [shape: bf16[16,32], index: 3, kind: input, shape index: {}]
  %s4 = inlined_call_operand.vmem [shape: bf16[32,48], index: 4, kind: input, shape index: {}]
  %s5 = inlined_call_operand.hbm [shape: bf16[128,128], index: 5, kind: input, shape index: {}]
  %s6 = inlined_call_operand.vmem [shape: f32[1,128], index: 6, kind: input, shape index: {}]
  %s7 = inlined_call_operand.vmem [shape: f32[32,8], index: 7, kind: output, shape index: {}]
  %s8 = sld [smem:[#allocation0]]
  $region50: #{tpu_custom_call.1} parent=0
    _
  %s10 = ssub.s32 1, %s8
  %s11 = scalar_select 0, %s10, %s8
  $region1: #{tpu_custom_call.1} parent=0
    #allocation3 [shape = 'u8[4096]{0}', space=vmem, size = 0x1000, scoped, tag = 'input window, operand 1, single buffered']
    #allocation4 [shape = 's32[1]{0}', space=sflag, size = 0x4, scoped, tag = 'scoped memory for tpu_custom_call.1']
    #allocation5 [shape = 'u8[4096]{0}', space=vmem, size = 0x1000, scoped, tag = 'input window, operand 3, single buffered']
    #allocation6 [shape = 's32[1]{0}', space=sflag, size = 0x4, scoped, tag = 'scoped memory for tpu_custom_call.1']
    #allocation7 [shape = 'u8[32768]{0}', space=vmem, size = 0x8000, scoped, tag = 'input window, operand 5, single buffered']
    %12 = vsyncpa [#allocation4], 0
    %13 = vsyncpa [#allocation6], 0
    // Predicated region
    $region2: #{tpu_custom_call.1} parent=1 // pred_check
      _
    $region3: #{tpu_custom_call.1} parent=1 // pred_check_branch
      %15 = sbr.rel (0) target = $region5
    $region4: #{tpu_custom_call.1} parent=1 // pred_region
      _
    $region5: #{tpu_custom_call.1} parent=1 // pred_fallthru
      _
    // Predicated region
    $region6: #{tpu_custom_call.1} parent=1 // pred_check
      _
    $region7: #{tpu_custom_call.1} parent=1 // pred_check_branch
      %17 = sbr.rel (0) target = $region9
    $region8: #{tpu_custom_call.1} parent=1 // pred_region
      %s19 = ssub.s32 128, 128
      %20 = vsyncadd [#allocation4], %s19
      %s21 = sshll.u32 [#allocation3], 4
      %s22 = int_to_ptr.vmem [resolvable:$true] %s21
      %27 = dma.hbm_to_vmem [thread:$0]  %s1, 128, %s22, [#allocation4], 64, 64, 4
    $region9: #{tpu_custom_call.1} parent=1 // pred_fallthru
      _
    // Predicated region
    $region10: #{tpu_custom_call.1} parent=1 // pred_check
      _
    $region11: #{tpu_custom_call.1} parent=1 // pred_check_branch
      %29 = sbr.rel (0) target = $region13
    $region12: #{tpu_custom_call.1} parent=1 // pred_region
      _
    $region13: #{tpu_custom_call.1} parent=1 // pred_fallthru
      _
    // Predicated region
    $region14: #{tpu_custom_call.1} parent=1 // pred_check
      _
    $region15: #{tpu_custom_call.1} parent=1 // pred_check_branch
      %31 = sbr.rel (0) target = $region17
    $region16: #{tpu_custom_call.1} parent=1 // pred_region
      %s33 = ssub.s32 128, 128
      %34 = vsyncadd [#allocation6], %s33
      %s35 = sshll.u32 [#allocation5], 4
      %s36 = int_to_ptr.vmem [resolvable:$true] %s35
      %41 = dma.hbm_to_vmem [thread:$0]  %s3, 128, %s36, [#allocation6], 64, 64, 4
    $region17: #{tpu_custom_call.1} parent=1 // pred_fallthru
      _
    // Predicated region
    $region18: #{tpu_custom_call.1} parent=1 // pred_check
      _
    $region19: #{tpu_custom_call.1} parent=1 // pred_check_branch
      %43 = sbr.rel (0) target = $region21
    $region20: #{tpu_custom_call.1} parent=1 // pred_region
      _
    $region21: #{tpu_custom_call.1} parent=1 // pred_fallthru
      _
    // Predicated region
    $region22: #{tpu_custom_call.1} parent=1 // pred_check
      _
    $region23: #{tpu_custom_call.1} parent=1 // pred_check_branch
      %45 = sbr.rel (0) target = $region25
    $region24: #{tpu_custom_call.1} parent=1 // pred_region
      %s47 = ssub.s32 1024, 1024
      %48 = vsyncadd [#allocation6], %s47
      %s49 = sshll.u32 [#allocation7], 4
      %s50 = int_to_ptr.vmem [resolvable:$true] %s49
      %55 = dma.hbm_to_vmem [thread:$0]  %s5, 1024, %s50, [#allocation6], 64, 64, 4
    $region25: #{tpu_custom_call.1} parent=1 // pred_fallthru
      _
    // Predicated region
    $region26: #{tpu_custom_call.1} parent=1 // pred_check
      _
    $region27: #{tpu_custom_call.1} parent=1 // pred_check_branch
      %57 = sbr.rel (0) target = $region29
    $region28: #{tpu_custom_call.1} parent=1 // pred_region
      _
    $region29: #{tpu_custom_call.1} parent=1 // pred_fallthru
      _
    // Predicated region
    $region30: #{tpu_custom_call.1} parent=1 // pred_check
      _
    $region31: #{tpu_custom_call.1} parent=1 // pred_check_branch
      %59 = sbr.rel (0) target = $region33
    $region32: #{tpu_custom_call.1} parent=1 // pred_region
      %60 = dma.done [#allocation4], 128
    $region33: #{tpu_custom_call.1} parent=1 // pred_fallthru
      _
    // Predicated region
    $region34: #{tpu_custom_call.1} parent=1 // pred_check
      _
    $region35: #{tpu_custom_call.1} parent=1 // pred_check_branch
      %62 = sbr.rel (0) target = $region37
    $region36: #{tpu_custom_call.1} parent=1 // pred_region
      %63 = dma.done [#allocation6], 128
    $region37: #{tpu_custom_call.1} parent=1 // pred_fallthru
      _
    // Predicated region
    $region38: #{tpu_custom_call.1} parent=1 // pred_check
      _
    $region39: #{tpu_custom_call.1} parent=1 // pred_check_branch
      %65 = sbr.rel (0) target = $region41
    $region40: #{tpu_custom_call.1} parent=1 // pred_region
      %66 = dma.done [#allocation6], 1024
    $region41: #{tpu_custom_call.1} parent=1 // pred_fallthru
      _
    %v68 = vld [vmem:[%s0] sm:$0xf]
    %v69 = vld [vmem:[%s0 + $0x4] sm:$0xf]
    %v70 = vld [vmem:[%s0 + $0x8] sm:$0xf]
    %v71 = vld [vmem:[%s0 + $0xc] sm:$0xf]
    %v72 = vld [vmem:[#allocation3] sm:$0xf]
    %v73 = vld [vmem:[#allocation3 + $0x4] sm:$0xf]
    %v74 = vld [vmem:[#allocation7] sm:$0xf]
    %v75 = vld [vmem:[#allocation7 + $0x4] sm:$0xf]
    %v80 = vunpack.c.l.b16 %v68
    %v81 = vunpack.c.l.b16 %v69
    %v82 = vunpack.c.l.b16 %v70
    %v83 = vunpack.c.l.b16 %v71
    %v84 = vpack.c.b16 %v81, %v80
    %v85 = vpack.c.b16 %v83, %v82
    %v88 = vunpack.c.l.b16 %v74
    %v89 = vunpack.c.l.b16 %v75
    %v90 = vpack.c.b16 %v89, %v88
    %vm92 = vcmask 130048
    %v94 = vsel %vm92, %v84, 0
    %v97 = vsel %vm92, %v85, 0
    %99 = vmatprep.subr.bf16.mxu0 0
    %100 = vmatpush1.bf16.msra.mxu0 %v90
    %101 = vmatprep.subr.bf16.mxu0 0
    %102 = vmatpush1.bf16.msra.mxu0 0
    %103 = vmatprep.subr.bf16.mxu0 0
    %104 = vmatpush1.bf16.msra.mxu0 0
    %105 = vmatprep.subr.bf16.mxu0 0
    %106 = vmatpush1.bf16.msra.mxu0 0
    %107 = vmatprep.subr.bf16.mxu0 0
    %108 = vmatpush1.bf16.msra.mxu0 0
    %109 = vmatprep.subr.bf16.mxu0 0
    %110 = vmatpush1.bf16.msra.mxu0 0
    %111 = vmatprep.subr.bf16.mxu0 0
    %112 = vmatpush1.bf16.msra.mxu0 0
    %113 = vmatprep.subr.bf16.mxu0 0
    %114 = vmatpush1.bf16.msra.mxu0 0
    %115 = vmatprep.subr.bf16.mxu0 0
    %116 = vmatpush1.bf16.msra.mxu0 0
    %117 = vmatprep.subr.bf16.mxu0 0
    %118 = vmatpush1.bf16.msra.mxu0 0
    %119 = vmatprep.subr.bf16.mxu0 0
    %120 = vmatpush1.bf16.msra.mxu0 0
    %121 = vmatprep.subr.bf16.mxu0 0
    %122 = vmatpush1.bf16.msra.mxu0 0
    %123 = vmatprep.subr.bf16.mxu0 0
    %124 = vmatpush1.bf16.msra.mxu0 0
    %125 = vmatprep.subr.bf16.mxu0 0
    %126 = vmatpush1.bf16.msra.mxu0 0
    %127 = vmatprep.subr.bf16.mxu0 0
    %128 = vmatpush1.bf16.msra.mxu0 0
    %129 = vmatprep.subr.bf16.mxu0 0
    %130 = vmatpush1.bf16.msra.mxu0 0
    %131 = vmatprep.mubr.bf16.mxu0 0
    %132 = vmatmul.mubr.bf16.gmra.mrb[0].mxu0 %v94
    %v133 = vpop.f32.mrb[0].mxu0
    %v134 = vadd.f32 0.0, %v133
    %v135 = vpop.f32.mrb[0].mxu0
    %v136 = vpop.f32.mrb[0].mxu0
    %v137 = vadd.f32 0.0, %v136
    %v138 = vpop.f32.mrb[0].mxu0
    %139 = vmatprep.mubr.bf16.mxu0 0
    %140 = vmatmul.mubr.bf16.gmra.mrb[0].mxu0 %v97
    %v141 = vpop.f32.mrb[0].mxu0
    %v142 = vadd.f32 0.0, %v141
    %v143 = vpop.f32.mrb[0].mxu0
    %v144 = vpop.f32.mrb[0].mxu0
    %v145 = vadd.f32 0.0, %v144
    %v146 = vpop.f32.mrb[0].mxu0
    %147 = vdwg.mxu0
    %v148 = vld [vmem:[#allocation7 + $0x8] sm:$0xf]
    %v149 = vld [vmem:[#allocation7 + $0xc] sm:$0x3]
    %v152 = vunpack.c.l.b16 %v72
    %v153 = vunpack.c.l.b16 %v73
    %v154 = vpack.c.b16 %v153, %v152
    %v157 = vunpack.c.l.b16 %v148
    %v158 = vunpack.c.l.b16 %v149
    %v159 = vpack.c.b16 %v158, %v157
    %vm160 = vcmask 97280
    %v162 = vsel %vm160, %v154, 0
    %vm164 = vcmask 1045504
    %v166 = vsel %vm164, %v159, 0
    %168 = vmatprep.subr.bf16.mxu0 0
    %169 = vmatpush1.bf16.msra.mxu0 %v166
    %170 = vmatprep.subr.bf16.mxu0 0
    %171 = vmatpush1.bf16.msra.mxu0 0
    %172 = vmatprep.subr.bf16.mxu0 0
    %173 = vmatpush1.bf16.msra.mxu0 0
    %174 = vmatprep.subr.bf16.mxu0 0
    %175 = vmatpush1.bf16.msra.mxu0 0
    %176 = vmatprep.subr.bf16.mxu0 0
    %177 = vmatpush1.bf16.msra.mxu0 0
    %178 = vmatprep.subr.bf16.mxu0 0
    %179 = vmatpush1.bf16.msra.mxu0 0
    %180 = vmatprep.subr.bf16.mxu0 0
    %181 = vmatpush1.bf16.msra.mxu0 0
    %182 = vmatprep.subr.bf16.mxu0 0
    %183 = vmatpush1.bf16.msra.mxu0 0
    %184 = vmatprep.subr.bf16.mxu0 0
    %185 = vmatpush1.bf16.msra.mxu0 0
    %186 = vmatprep.subr.bf16.mxu0 0
    %187 = vmatpush1.bf16.msra.mxu0 0
    %188 = vmatprep.subr.bf16.mxu0 0
    %189 = vmatpush1.bf16.msra.mxu0 0
    %190 = vmatprep.subr.bf16.mxu0 0
    %191 = vmatpush1.bf16.msra.mxu0 0
    %192 = vmatprep.subr.bf16.mxu0 0
    %193 = vmatpush1.bf16.msra.mxu0 0
    %194 = vmatprep.subr.bf16.mxu0 0
    %195 = vmatpush1.bf16.msra.mxu0 0
    %196 = vmatprep.subr.bf16.mxu0 0
    %197 = vmatpush1.bf16.msra.mxu0 0
    %198 = vmatprep.subr.bf16.mxu0 0
    %199 = vmatpush1.bf16.msra.mxu0 0
    %200 = vmatprep.mubr.bf16.mxu0 0
    %201 = vmatmul.mubr.bf16.gmra.mrb[0].mxu0 %v162
    %v202 = vpop.f32.mrb[0].mxu0
    %v203 = vadd.f32 0.0, %v202
    %v204 = vpop.f32.mrb[0].mxu0
    %v205 = vpop.f32.mrb[0].mxu0
    %v206 = vadd.f32 0.0, %v205
    %v207 = vpop.f32.mrb[0].mxu0
    %208 = vdwg.mxu0
    %v209 = vpack.c.bf16 %v206, %v203
    %vm210 = vcmask 261120
    %211 = vst.msk [vmem:[#allocation2] sm:$0xff] %vm210, %v209
    %v212 = vpack.c.bf16 %v137, %v134
    %v213 = vpack.c.bf16 %v145, %v142
    %214 = vst.msk [vmem:[#allocation2 + $0x8] sm:$0xff] %vm210, %v212
    %215 = vst.msk [vmem:[#allocation2 + $0x10] sm:$0xff] %vm210, %v213
    %v216 = vld [vmem:[%s2] sm:$0xf]
    %v217 = vld [vmem:[%s2 + $0x4] sm:$0xf]
    %v218 = vld [vmem:[%s2 + $0x8] sm:$0xf]
    %v219 = vld [vmem:[%s2 + $0xc] sm:$0xf]
    %v220 = vld [vmem:[#allocation2] sm:$0xff]
    %v221 = vld [vmem:[#allocation2 + $0x8] sm:$0xff]
    %v222 = vld [vmem:[#allocation2 + $0x10] sm:$0xff]
    %v223 = vld [vmem:[#allocation5] sm:$0xf]
    %v224 = vld [vmem:[#allocation5 + $0x4] sm:$0xf]
    %v229 = vunpack.c.l.b16 %v216
    %v230 = vunpack.c.l.b16 %v217
    %v231 = vunpack.c.l.b16 %v218
    %v232 = vunpack.c.l.b16 %v219
    %v233 = vpack.c.b16 %v230, %v229
    %v234 = vpack.c.b16 %v232, %v231
    %239 = vrot.lane.b32.xlu0 %v134, 64
    %v240 = vpop.permute.xlu0 %239
    %241 = vrot.lane.b32.xlu0 %v137, 64
    %v242 = vpop.permute.xlu0 %241
    %243 = vrot.lane.b32.xlu0 %v142, 64
    %v244 = vpop.permute.xlu0 %243
    %245 = vrot.lane.b32.xlu0 %v145, 64
    %v246 = vpop.permute.xlu0 %245
    %vm251 = vcmask 392192
    %v253 = vsel %vm251, %v233, 0
    %v256 = vsel %vm251, %v234, 0
    %258 = vmatprep.subr.bf16.mxu0 0
    %259 = vmatpush1.bf16.msra.mxu0 %v220
    %260 = vmatprep.subr.bf16.mxu0 0
    %261 = vmatpush1.bf16.msra.mxu0 %v221
    %262 = vmatprep.subr.bf16.mxu0 0
    %263 = vmatpush1.bf16.msra.mxu0 %v222
    %264 = vmatprep.subr.bf16.mxu0 0
    %265 = vmatpush1.bf16.msra.mxu0 0
    %266 = vmatprep.subr.bf16.mxu0 0
    %267 = vmatpush1.bf16.msra.mxu0 0
    %268 = vmatprep.subr.bf16.mxu0 0
    %269 = vmatpush1.bf16.msra.mxu0 0
    %270 = vmatprep.subr.bf16.mxu0 0
    %271 = vmatpush1.bf16.msra.mxu0 0
    %272 = vmatprep.subr.bf16.mxu0 0
    %273 = vmatpush1.bf16.msra.mxu0 0
    %274 = vmatprep.subr.bf16.mxu0 0
    %275 = vmatpush1.bf16.msra.mxu0 0
    %276 = vmatprep.subr.bf16.mxu0 0
    %277 = vmatpush1.bf16.msra.mxu0 0
    %278 = vmatprep.subr.bf16.mxu0 0
    %279 = vmatpush1.bf16.msra.mxu0 0
    %280 = vmatprep.subr.bf16.mxu0 0
    %281 = vmatpush1.bf16.msra.mxu0 0
    %282 = vmatprep.subr.bf16.mxu0 0
    %283 = vmatpush1.bf16.msra.mxu0 0
    %284 = vmatprep.subr.bf16.mxu0 0
    %285 = vmatpush1.bf16.msra.mxu0 0
    %286 = vmatprep.subr.bf16.mxu0 0
    %287 = vmatpush1.bf16.msra.mxu0 0
    %288 = vmatprep.subr.bf16.mxu0 0
    %289 = vmatpush1.bf16.msra.mxu0 0
    %290 = vmatprep.mubr.bf16.mxu0 0
    %291 = vmatmul.mubr.bf16.gmra.mrb[0].mxu0 %v253
    %v292 = vpop.f32.mrb[0].mxu0
    %v293 = vadd.f32 %v240, %v292
    %v294 = vpop.f32.mrb[0].mxu0
    %v295 = vpop.f32.mrb[0].mxu0
    %v296 = vadd.f32 %v242, %v295
    %v297 = vpop.f32.mrb[0].mxu0
    %298 = vmatprep.mubr.bf16.mxu0 0
    %299 = vmatmul.mubr.bf16.gmra.mrb[0].mxu0 %v256
    %v300 = vpop.f32.mrb[0].mxu0
    %v301 = vadd.f32 %v244, %v300
    %v302 = vpop.f32.mrb[0].mxu0
    %v303 = vpop.f32.mrb[0].mxu0
    %v304 = vadd.f32 %v246, %v303
    %v305 = vpop.f32.mrb[0].mxu0
    %306 = vdwg.mxu0
    %v307 = vld [vmem:[%s6] sm:$0x1]
    %v309 = vlaneseq
    %v310 = vshrl.u32 %v309, 7
    %v311 = vsub.s32 0, %v310
    %v312 = vrot.slane %v307, %v311
    %v314 = vadd.f32 %v293, %v312
    %v315 = vadd.f32 %v296, %v312
    %v316 = vadd.f32 %v301, %v312
    %v317 = vadd.f32 %v304, %v312
    %v318 = vmax.f32 %v314, 0.0
    %v319 = vmax.f32 %v315, 0.0
    %v320 = vmax.f32 %v316, 0.0
    %v321 = vmax.f32 %v317, 0.0
    %v324 = vunpack.c.l.b16 %v223
    %v325 = vunpack.c.l.b16 %v224
    %v326 = vpack.c.b16 %v325, %v324
    %329 = vrot.lane.b32.xlu0 %v212, 96
    %v330 = vpop.permute.xlu0 %329
    %331 = vrot.lane.b32.xlu0 %v213, 96
    %v332 = vpop.permute.xlu0 %331
    %337 = vrot.lane.b32.xlu0 %v203, 96
    %v338 = vpop.permute.xlu0 %337
    %339 = vrot.lane.b32.xlu0 %v206, 96
    %v340 = vpop.permute.xlu0 %339
    %v344 = vsel %vm210, %v326, 0
    %346 = vmatprep.subr.bf16.mxu0 0
    %347 = vmatpush1.bf16.msra.mxu0 %v330
    %348 = vmatprep.subr.bf16.mxu0 0
    %349 = vmatpush1.bf16.msra.mxu0 %v332
    %350 = vmatprep.subr.bf16.mxu0 0
    %351 = vmatpush1.bf16.msra.mxu0 0
    %352 = vmatprep.subr.bf16.mxu0 0
    %353 = vmatpush1.bf16.msra.mxu0 0
    %354 = vmatprep.subr.bf16.mxu0 0
    %355 = vmatpush1.bf16.msra.mxu0 0
    %356 = vmatprep.subr.bf16.mxu0 0
    %357 = vmatpush1.bf16.msra.mxu0 0
    %358 = vmatprep.subr.bf16.mxu0 0
    %359 = vmatpush1.bf16.msra.mxu0 0
    %360 = vmatprep.subr.bf16.mxu0 0
    %361 = vmatpush1.bf16.msra.mxu0 0
    %362 = vmatprep.subr.bf16.mxu0 0
    %363 = vmatpush1.bf16.msra.mxu0 0
    %364 = vmatprep.subr.bf16.mxu0 0
    %365 = vmatpush1.bf16.msra.mxu0 0
    %366 = vmatprep.subr.bf16.mxu0 0
    %367 = vmatpush1.bf16.msra.mxu0 0
    %368 = vmatprep.subr.bf16.mxu0 0
    %369 = vmatpush1.bf16.msra.mxu0 0
    %370 = vmatprep.subr.bf16.mxu0 0
    %371 = vmatpush1.bf16.msra.mxu0 0
    %372 = vmatprep.subr.bf16.mxu0 0
    %373 = vmatpush1.bf16.msra.mxu0 0
    %374 = vmatprep.subr.bf16.mxu0 0
    %375 = vmatpush1.bf16.msra.mxu0 0
    %376 = vmatprep.subr.bf16.mxu0 0
    %377 = vmatpush1.bf16.msra.mxu0 0
    %378 = vmatprep.mubr.bf16.mxu0 0
    %379 = vmatmul.mubr.bf16.gmra.mrb[0].mxu0 %v344
    %v380 = vpop.f32.mrb[0].mxu0
    %v381 = vadd.f32 %v338, %v380
    %v382 = vpop.f32.mrb[0].mxu0
    %v383 = vpop.f32.mrb[0].mxu0
    %v384 = vadd.f32 %v340, %v383
    %v385 = vpop.f32.mrb[0].mxu0
    %386 = vdwg.mxu0
    %387 = vrot.lane.b32.xlu0 %v312, 96
    %v388 = vpop.permute.xlu0 %387
    %v390 = vadd.f32 %v381, %v388
    %v391 = vadd.f32 %v384, %v388
    %v392 = vmax.f32 %v390, 0.0
    %v393 = vmax.f32 %v391, 0.0
    %v394 = vpack.c.bf16 %v319, %v318
    %v395 = vpack.c.bf16 %v321, %v320
    %v396 = vld [vmem:[#allocation7 + $0x10] sm:$0xf]
    %v397 = vld [vmem:[#allocation7 + $0x14] sm:$0xf]
    %v398 = vld [vmem:[#allocation7 + $0x18] sm:$0xf]
    %v399 = vld [vmem:[#allocation7 + $0x1c] sm:$0xf]
    %v404 = vunpack.c.l.b16 %v396
    %v405 = vunpack.c.l.b16 %v397
    %v406 = vunpack.c.l.b16 %v398
    %v407 = vunpack.c.l.b16 %v399
    %v408 = vpack.c.b16 %v405, %v404
    %v409 = vpack.c.b16 %v407, %v406
    %v413 = vsel %vm210, %v394, 0
    %v416 = vsel %vm210, %v395, 0
    %418 = vmatprep.subr.bf16.mxu0 0
    %419 = vmatpush1.bf16.msra.mxu0 %v408
    %420 = vmatprep.subr.bf16.mxu0 0
    %421 = vmatpush1.bf16.msra.mxu0 %v409
    %422 = vmatprep.subr.bf16.mxu0 0
    %423 = vmatpush1.bf16.msra.mxu0 0
    %424 = vmatprep.subr.bf16.mxu0 0
    %425 = vmatpush1.bf16.msra.mxu0 0
    %426 = vmatprep.subr.bf16.mxu0 0
    %427 = vmatpush1.bf16.msra.mxu0 0
    %428 = vmatprep.subr.bf16.mxu0 0
    %429 = vmatpush1.bf16.msra.mxu0 0
    %430 = vmatprep.subr.bf16.mxu0 0
    %431 = vmatpush1.bf16.msra.mxu0 0
    %432 = vmatprep.subr.bf16.mxu0 0
    %433 = vmatpush1.bf16.msra.mxu0 0
    %434 = vmatprep.subr.bf16.mxu0 0
    %435 = vmatpush1.bf16.msra.mxu0 0
    %436 = vmatprep.subr.bf16.mxu0 0
    %437 = vmatpush1.bf16.msra.mxu0 0
    %438 = vmatprep.subr.bf16.mxu0 0
    %439 = vmatpush1.bf16.msra.mxu0 0
    %440 = vmatprep.subr.bf16.mxu0 0
    %441 = vmatpush1.bf16.msra.mxu0 0
    %442 = vmatprep.subr.bf16.mxu0 0
    %443 = vmatpush1.bf16.msra.mxu0 0
    %444 = vmatprep.subr.bf16.mxu0 0
    %445 = vmatpush1.bf16.msra.mxu0 0
    %446 = vmatprep.subr.bf16.mxu0 0
    %447 = vmatpush1.bf16.msra.mxu0 0
    %448 = vmatprep.subr.bf16.mxu0 0
    %449 = vmatpush1.bf16.msra.mxu0 0
    %450 = vmatprep.mubr.bf16.mxu0 0
    %451 = vmatmul.mubr.bf16.gmra.mrb[0].mxu0 %v413
    %v452 = vpop.f32.mrb[0].mxu0
    %v453 = vadd.f32 0.0, %v452
    %v454 = vpop.f32.mrb[0].mxu0
    %v455 = vpop.f32.mrb[0].mxu0
    %v456 = vadd.f32 0.0, %v455
    %v457 = vpop.f32.mrb[0].mxu0
    %458 = vmatprep.mubr.bf16.mxu0 0
    %459 = vmatmul.mubr.bf16.gmra.mrb[0].mxu0 %v416
    %v460 = vpop.f32.mrb[0].mxu0
    %v461 = vadd.f32 0.0, %v460
    %v462 = vpop.f32.mrb[0].mxu0
    %v463 = vpop.f32.mrb[0].mxu0
    %v464 = vadd.f32 0.0, %v463
    %v465 = vpop.f32.mrb[0].mxu0
    %466 = vdwg.mxu0
    %v467 = vpack.c.bf16 %v393, %v392
    %v468 = vld [vmem:[#allocation7 + $0x20] sm:$0xf]
    %v469 = vld [vmem:[#allocation7 + $0x24] sm:$0xf]
    %v470 = vld [vmem:[#allocation7 + $0x28] sm:$0xf]
    %v471 = vld [vmem:[#allocation7 + $0x2c] sm:$0xf]
    %v476 = vunpack.c.l.b16 %v468
    %v477 = vunpack.c.l.b16 %v469
    %v478 = vunpack.c.l.b16 %v470
    %v479 = vunpack.c.l.b16 %v471
    %v480 = vpack.c.b16 %v477, %v476
    %v481 = vpack.c.b16 %v479, %v478
    %v485 = vsel %vm210, %v467, 0
    %487 = vmatprep.subr.bf16.mxu0 0
    %488 = vmatpush1.bf16.msra.mxu0 %v480
    %489 = vmatprep.subr.bf16.mxu0 0
    %490 = vmatpush1.bf16.msra.mxu0 %v481
    %491 = vmatprep.subr.bf16.mxu0 0
    %492 = vmatpush1.bf16.msra.mxu0 0
    %493 = vmatprep.subr.bf16.mxu0 0
    %494 = vmatpush1.bf16.msra.mxu0 0
    %495 = vmatprep.subr.bf16.mxu0 0
    %496 = vmatpush1.bf16.msra.mxu0 0
    %497 = vmatprep.subr.bf16.mxu0 0
    %498 = vmatpush1.bf16.msra.mxu0 0
    %499 = vmatprep.subr.bf16.mxu0 0
    %500 = vmatpush1.bf16.msra.mxu0 0
    %501 = vmatprep.subr.bf16.mxu0 0
    %502 = vmatpush1.bf16.msra.mxu0 0
    %503 = vmatprep.subr.bf16.mxu0 0
    %504 = vmatpush1.bf16.msra.mxu0 0
    %505 = vmatprep.subr.bf16.mxu0 0
    %506 = vmatpush1.bf16.msra.mxu0 0
    %507 = vmatprep.subr.bf16.mxu0 0
    %508 = vmatpush1.bf16.msra.mxu0 0
    %509 = vmatprep.subr.bf16.mxu0 0
    %510 = vmatpush1.bf16.msra.mxu0 0
    %511 = vmatprep.subr.bf16.mxu0 0
    %512 = vmatpush1.bf16.msra.mxu0 0
    %513 = vmatprep.subr.bf16.mxu0 0
    %514 = vmatpush1.bf16.msra.mxu0 0
    %515 = vmatprep.subr.bf16.mxu0 0
    %516 = vmatpush1.bf16.msra.mxu0 0
    %517 = vmatprep.subr.bf16.mxu0 0
    %518 = vmatpush1.bf16.msra.mxu0 0
    %519 = vmatprep.mubr.bf16.mxu0 0
    %520 = vmatmul.mubr.bf16.gmra.mrb[0].mxu0 %v485
    %v521 = vpop.f32.mrb[0].mxu0
    %v522 = vadd.f32 0.0, %v521
    %v523 = vpop.f32.mrb[0].mxu0
    %v524 = vpop.f32.mrb[0].mxu0
    %v525 = vadd.f32 0.0, %v524
    %v526 = vpop.f32.mrb[0].mxu0
    %527 = vdwg.mxu0
    %v528 = vpack.c.bf16 %v525, %v522
    %529 = vst.msk [vmem:[#allocation2] sm:$0xff] %vm210, %v528
    %v530 = vpack.c.bf16 %v456, %v453
    %v531 = vpack.c.bf16 %v464, %v461
    %532 = vst.msk [vmem:[#allocation2 + $0x8] sm:$0xff] %vm210, %v530
    %533 = vst.msk [vmem:[#allocation2 + $0x10] sm:$0xff] %vm210, %v531
    %v534 = vld [vmem:[%s4] sm:$0xf]
    %v535 = vld [vmem:[%s4 + $0x4] sm:$0xf]
    %v536 = vld [vmem:[%s4 + $0x8] sm:$0xf]
    %v537 = vld [vmem:[%s4 + $0xc] sm:$0xf]
    %v538 = vld [vmem:[#allocation2] sm:$0xff]
    %v539 = vld [vmem:[#allocation2 + $0x8] sm:$0xff]
    %v540 = vld [vmem:[#allocation2 + $0x10] sm:$0xff]
    %v545 = vunpack.c.l.b16 %v534
    %v546 = vunpack.c.l.b16 %v535
    %v547 = vunpack.c.l.b16 %v536
    %v548 = vunpack.c.l.b16 %v537
    %v549 = vpack.c.b16 %v546, %v545
    %v550 = vpack.c.b16 %v548, %v547
    %555 = vrot.lane.b32.xlu0 %v453, 96
    %v556 = vpop.permute.xlu0 %555
    %557 = vrot.lane.b32.xlu0 %v456, 96
    %v558 = vpop.permute.xlu0 %557
    %559 = vrot.lane.b32.xlu0 %v461, 96
    %v560 = vpop.permute.xlu0 %559
    %561 = vrot.lane.b32.xlu0 %v464, 96
    %v562 = vpop.permute.xlu0 %561
    %v568 = vsel %vm251, %v549, 0
    %v571 = vsel %vm251, %v550, 0
    %573 = vmatprep.subr.bf16.mxu0 0
    %574 = vmatpush1.bf16.msra.mxu0 %v538
    %575 = vmatprep.subr.bf16.mxu0 0
    %576 = vmatpush1.bf16.msra.mxu0 %v539
    %577 = vmatprep.subr.bf16.mxu0 0
    %578 = vmatpush1.bf16.msra.mxu0 %v540
    %579 = vmatprep.subr.bf16.mxu0 0
    %580 = vmatpush1.bf16.msra.mxu0 0
    %581 = vmatprep.subr.bf16.mxu0 0
    %582 = vmatpush1.bf16.msra.mxu0 0
    %583 = vmatprep.subr.bf16.mxu0 0
    %584 = vmatpush1.bf16.msra.mxu0 0
    %585 = vmatprep.subr.bf16.mxu0 0
    %586 = vmatpush1.bf16.msra.mxu0 0
    %587 = vmatprep.subr.bf16.mxu0 0
    %588 = vmatpush1.bf16.msra.mxu0 0
    %589 = vmatprep.subr.bf16.mxu0 0
    %590 = vmatpush1.bf16.msra.mxu0 0
    %591 = vmatprep.subr.bf16.mxu0 0
    %592 = vmatpush1.bf16.msra.mxu0 0
    %593 = vmatprep.subr.bf16.mxu0 0
    %594 = vmatpush1.bf16.msra.mxu0 0
    %595 = vmatprep.subr.bf16.mxu0 0
    %596 = vmatpush1.bf16.msra.mxu0 0
    %597 = vmatprep.subr.bf16.mxu0 0
    %598 = vmatpush1.bf16.msra.mxu0 0
    %599 = vmatprep.subr.bf16.mxu0 0
    %600 = vmatpush1.bf16.msra.mxu0 0
    %601 = vmatprep.subr.bf16.mxu0 0
    %602 = vmatpush1.bf16.msra.mxu0 0
    %603 = vmatprep.subr.bf16.mxu0 0
    %604 = vmatpush1.bf16.msra.mxu0 0
    %605 = vmatprep.mubr.bf16.mxu0 0
    %606 = vmatmul.mubr.bf16.gmra.mrb[0].mxu0 %v568
    %v607 = vpop.f32.mrb[0].mxu0
    %v608 = vadd.f32 %v556, %v607
    %v609 = vpop.f32.mrb[0].mxu0
    %v610 = vpop.f32.mrb[0].mxu0
    %v611 = vadd.f32 %v558, %v610
    %v612 = vpop.f32.mrb[0].mxu0
    %613 = vmatprep.mubr.bf16.mxu0 0
    %614 = vmatmul.mubr.bf16.gmra.mrb[0].mxu0 %v571
    %v615 = vpop.f32.mrb[0].mxu0
    %v616 = vadd.f32 %v560, %v615
    %v617 = vpop.f32.mrb[0].mxu0
    %v618 = vpop.f32.mrb[0].mxu0
    %v619 = vadd.f32 %v562, %v618
    %v620 = vpop.f32.mrb[0].mxu0
    %621 = vdwg.mxu0
    %v622 = vld [vmem:[%s6] sm:$0x1]
    %v624 = vlaneseq
    %v625 = vshrl.u32 %v624, 7
    %v626 = vsub.s32 0, %v625
    %v627 = vrot.slane %v622, %v626
    %628 = vrot.lane.b32.xlu0 %v627, 64
    %v629 = vpop.permute.xlu0 %628
    %v631 = vadd.f32 %v608, %v629
    %v632 = vadd.f32 %v611, %v629
    %v633 = vadd.f32 %v616, %v629
    %v634 = vadd.f32 %v619, %v629
    %v635 = vmax.f32 %v631, 0.0
    %v636 = vmax.f32 %v632, 0.0
    %v637 = vmax.f32 %v633, 0.0
    %v638 = vmax.f32 %v634, 0.0
    %v639 = vpack.c.bf16 %v636, %v635
    %v640 = vpack.c.bf16 %v638, %v637
    %v641 = vld [vmem:[#allocation7 + $0x30] sm:$0xf]
    %v642 = vld [vmem:[#allocation7 + $0x34] sm:$0xf]
    %v643 = vld [vmem:[#allocation7 + $0x38] sm:$0xf]
    %v644 = vld [vmem:[#allocation7 + $0x3c] sm:$0xf]
    %v649 = vunpack.c.l.b16 %v641
    %v650 = vunpack.c.l.b16 %v642
    %v651 = vunpack.c.l.b16 %v643
    %v652 = vunpack.c.l.b16 %v644
    %v653 = vpack.c.b16 %v650, %v649
    %v654 = vpack.c.b16 %v652, %v651
    %657 = vrot.lane.b32.xlu0 %v627, 32
    %v658 = vpop.permute.xlu0 %657
    %v661 = vsel %vm210, %v639, 0
    %v664 = vsel %vm210, %v640, 0
    %666 = vmatprep.subr.bf16.mxu0 0
    %667 = vmatpush1.bf16.msra.mxu0 %v653
    %668 = vmatprep.subr.bf16.mxu0 0
    %669 = vmatpush1.bf16.msra.mxu0 %v654
    %670 = vmatprep.subr.bf16.mxu0 0
    %671 = vmatpush1.bf16.msra.mxu0 0
    %672 = vmatprep.subr.bf16.mxu0 0
    %673 = vmatpush1.bf16.msra.mxu0 0
    %674 = vmatprep.subr.bf16.mxu0 0
    %675 = vmatpush1.bf16.msra.mxu0 0
    %676 = vmatprep.subr.bf16.mxu0 0
    %677 = vmatpush1.bf16.msra.mxu0 0
    %678 = vmatprep.subr.bf16.mxu0 0
    %679 = vmatpush1.bf16.msra.mxu0 0
    %680 = vmatprep.subr.bf16.mxu0 0
    %681 = vmatpush1.bf16.msra.mxu0 0
    %682 = vmatprep.subr.bf16.mxu0 0
    %683 = vmatpush1.bf16.msra.mxu0 0
    %684 = vmatprep.subr.bf16.mxu0 0
    %685 = vmatpush1.bf16.msra.mxu0 0
    %686 = vmatprep.subr.bf16.mxu0 0
    %687 = vmatpush1.bf16.msra.mxu0 0
    %688 = vmatprep.subr.bf16.mxu0 0
    %689 = vmatpush1.bf16.msra.mxu0 0
    %690 = vmatprep.subr.bf16.mxu0 0
    %691 = vmatpush1.bf16.msra.mxu0 0
    %692 = vmatprep.subr.bf16.mxu0 0
    %693 = vmatpush1.bf16.msra.mxu0 0
    %694 = vmatprep.subr.bf16.mxu0 0
    %695 = vmatpush1.bf16.msra.mxu0 0
    %696 = vmatprep.subr.bf16.mxu0 0
    %697 = vmatpush1.bf16.msra.mxu0 0
    %698 = vmatprep.mubr.bf16.mxu0 0
    %699 = vmatmul.mubr.bf16.gmra.mrb[0].mxu0 %v661
    %v700 = vpop.f32.mrb[0].mxu0
    %v701 = vadd.f32 %v658, %v700
    %v702 = vpop.f32.mrb[0].mxu0
    %v703 = vpop.f32.mrb[0].mxu0
    %v704 = vadd.f32 %v658, %v703
    %v705 = vpop.f32.mrb[0].mxu0
    %706 = vmatprep.mubr.bf16.mxu0 0
    %707 = vmatmul.mubr.bf16.gmra.mrb[0].mxu0 %v664
    %v708 = vpop.f32.mrb[0].mxu0
    %v709 = vadd.f32 %v658, %v708
    %v710 = vpop.f32.mrb[0].mxu0
    %v711 = vpop.f32.mrb[0].mxu0
    %v712 = vadd.f32 %v658, %v711
    %v713 = vpop.f32.mrb[0].mxu0
    %714 = vdwg.mxu0
    %vm715 = vcmask 64512
    %716 = vst.msk [vmem:[%s7] sm:$0xff] %vm715, %v701
    %717 = vst.msk [vmem:[%s7 + $0x8] sm:$0xff] %vm715, %v704
    %718 = vst.msk [vmem:[%s7 + $0x10] sm:$0xff] %vm715, %v709
    %719 = vst.msk [vmem:[%s7 + $0x18] sm:$0xff] %vm715, %v712
    // Predicated region
    $region42: #{tpu_custom_call.1} parent=1 // pred_check
      _
    $region43: #{tpu_custom_call.1} parent=1 // pred_check_branch
      %721 = sbr.rel (0) target = $region45
    $region44: #{tpu_custom_call.1} parent=1 // pred_region
      _
    $region45: #{tpu_custom_call.1} parent=1 // pred_fallthru
      _
    // Predicated region
    $region46: #{tpu_custom_call.1} parent=1 // pred_check
      _
    $region47: #{tpu_custom_call.1} parent=1 // pred_check_branch
      %723 = sbr.rel (0) target = $region49
    $region48: #{tpu_custom_call.1} parent=1 // pred_region
      _
    $region49: #{tpu_custom_call.1} parent=1 // pred_fallthru
      _
    %724 = vsyncpa [#allocation4], 1
    %725 = vsyncpa [#allocation6], 1

</llo_original>
